<compile_context>
chip_gen: v5e
topology: v5e:2x2
jax: 0.10.0
libtpu: 0.0.40
codegen_flags: <defaults>
</compile_context>

<pallas_src>
import functools

import jax
import jax.numpy as jnp
from jax.experimental import pallas as pl
from jax.experimental.pallas import tpu as pltpu


def _patchnce_kernel(q_ref, k_ref, kg_ref, loss_ref, *, inv_T):
    # Blocks: q_ref (1, TQ, D) bf16, k_ref (1, N, D) bf16, kg_ref (1, N, D) bf16,
    #         loss_ref (1, 1, TQ) f32.
    q = q_ref[0]          # [TQ, D] bf16 (this tile's queries)
    k = k_ref[0]          # [N,  D] bf16 (all keys, resident per batch)
    kg = kg_ref[0]        # [N,  D] bf16 (keys gathered by sample_id, resident)
    tq = q.shape[0]
    qi = pl.program_id(1)

    f32 = jnp.float32
    contract_d = (((1,), (1,)), ((), ()))   # contract the D axis of both

    # --- sim^T[m, i] = k_m . q_i  ->  l_pos/T per query (lane-dense row)
    sim_t = jax.lax.dot_general(k, q, contract_d, preferred_element_type=f32)
    p_row = jnp.max(sim_t, axis=0, keepdims=True) * inv_T            # [1, TQ]

    # --- logits^T[j, i] = (q_i . k[sample_id[j]]) / T
    logits_t = jax.lax.dot_general(kg, q, contract_d,
                                   preferred_element_type=f32) * inv_T  # [N, TQ]

    # --- single softmax pass (one exp over N x TQ)
    m_row = jnp.max(logits_t, axis=0, keepdims=True)                 # [1, TQ]
    e = jnp.exp(logits_t - m_row)                                    # [N, TQ]
    s_row = jnp.sum(e, axis=0, keepdims=True)                        # [1, TQ]

    # --- target logit of row i ("diagonal" of l_same): q_i . kg[qi*tq + i]
    # computed as a TQxD row-dot against this tile's slice of kg (no NxTQ
    # iota/eye mask, no full-N reduce).
    start = qi * tq
    if tq % 8 == 0:
        start = pl.multiple_of(start, 8)
    kg_tile = kg_ref[0, pl.ds(start, tq), :]                         # [TQ, D]
    prod = q.astype(f32) * kg_tile.astype(f32)
    diag_row = (jnp.sum(prod, axis=1) * inv_T)[None, :]              # [1, TQ]

    # cross_entropy(reduction='none') with label == row index
    loss_same = m_row + jnp.log(s_row) - diag_row

    # loss_max: same row but with the diagonal replaced by p = l_pos / T.
    # Correct the existing softmax stats analytically (no second exp pass).
    m2 = jnp.maximum(m_row, p_row)
    s_off = jnp.maximum(s_row - jnp.exp(diag_row - m_row), 0.0)      # off-diag sum
    s2 = s_off * jnp.exp(m_row - m2) + jnp.exp(p_row - m2)
    loss_max = m2 + jnp.log(s2) - p_row

    loss_ref[0] = (0.7 * loss_same + 0.3 * loss_max).astype(loss_ref.dtype)


def _pick_tq(N, B):
    """Query-row tile: cap the N^2-scaling intermediates and, when the batch is
    tiny, create >= 2 grid steps so v7x's two TensorCores both get work."""
    tq = N
    if N > 512:
        for cand in (512, 256, 128):
            if N % cand == 0:
                tq = cand
                break
        # TODO(synk): mask ragged query tiles instead of falling back to tq=N.
    if B * (N // tq) < 2:
        for cand in (256, 128):
            if cand < tq and N % cand == 0:
                tq = cand
                break
    return tq


def patch_nce_loss_v2(feat_q, feat_k, sample_id, nce_T=0.07):
    B, N, D = feat_q.shape
    assert sample_id.shape[-1] == N, (
        "kernel assumes len(sample_id) == num_patches (batch_dim_for_bmm == batchSize)")

    # bf16 into the MXU / HBM; all softmax & CE math stays f32 in-kernel.
    feat_q = feat_q.astype(jnp.bfloat16)
    feat_k = feat_k.astype(jnp.bfloat16)
    # Gather once in the wrapper (cheap: N*D*2 bytes per batch element) and
    # stream as a third resident bf16 block -- replaces the in-kernel one-hot
    # gather matmul entirely.
    feat_ks = jnp.take(feat_k, sample_id.astype(jnp.int32), axis=1)   # [B, N, D]

    tq = _pick_tq(N, B)
    n_qt = N // tq

    out = pl.pallas_call(
        functools.partial(_patchnce_kernel, inv_T=1.0 / float(nce_T)),
        out_shape=jax.ShapeDtypeStruct((B, 1, N), jnp.float32),
        grid_spec=pltpu.PrefetchScalarGridSpec(
            num_scalar_prefetch=0,
            grid=(B, n_qt),
            in_specs=[
                pl.BlockSpec((1, tq, D), lambda b, t: (b, t, 0)),    # feat_q tile
                pl.BlockSpec((1, N, D), lambda b, t: (b, 0, 0)),     # feat_k (resident)
                pl.BlockSpec((1, N, D), lambda b, t: (b, 0, 0)),     # gathered feat_k (resident)
            ],
            out_specs=pl.BlockSpec((1, 1, tq), lambda b, t: (b, 0, t)),
        ),
        compiler_params=pltpu.CompilerParams(
            dimension_semantics=("parallel", "parallel"),
            vmem_limit_bytes=32 * 1024 * 1024),
    )(feat_q, feat_k, feat_ks)

    # matches torch: loss has shape [batchSize * npatches]
    return out.reshape(B * N)


def _reference_loss(feat_q, feat_k, sample_id, nce_T=0.07):
    """Pure-JAX f32 reference mirroring the PyTorch module line-by-line."""
    feat_q = feat_q.astype(jnp.float32)
    feat_k = feat_k.astype(jnp.float32)
    B, N, D = feat_q.shape
    sim_qk = jnp.einsum('bnd,bmd->bnm', feat_q, feat_k)
    l_pos = sim_qk.max(axis=-1)                                # [B, N]
    fks = feat_k[:, sample_id, :]                              # [B, N, D]
    l_cur = jnp.einsum('bnd,bmd->bnm', feat_q, fks)            # [B, N, N]
    idx = jnp.arange(N)
    l_max = l_cur.at[:, idx, idx].set(l_pos)
    labels = jnp.tile(jnp.arange(N), B)

    def ce(logits2d):
        logits2d = logits2d / nce_T
        lse = jax.scipy.special.logsumexp(logits2d, axis=-1)
        tgt = jnp.take_along_axis(logits2d, labels[:, None], axis=-1)[:, 0]
        return lse - tgt

    loss_max = ce(l_max.reshape(-1, N))
    loss_same = ce(l_cur.reshape(-1, N))
    return 0.7 * loss_same + 0.3 * loss_max


if __name__ == "__main__":
    B, N, D = 2, 16, 32
    nce_T = 0.07

    key = jax.random.PRNGKey(0)
    kq, kk, ks = jax.random.split(key, 3)
    feat_q = jax.random.normal(kq, (B, N, D), dtype=jnp.float32)
    feat_k = jax.random.normal(kk, (B, N, D), dtype=jnp.float32)
    # L2-normalize like typical PatchNCE feature heads.
    feat_q = feat_q / jnp.linalg.norm(feat_q, axis=-1, keepdims=True)
    feat_k = feat_k / jnp.linalg.norm(feat_k, axis=-1, keepdims=True)
    # bf16 in HBM (native MXU dtype, half the DMA bytes).
    feat_q = feat_q.astype(jnp.bfloat16)
    feat_k = feat_k.astype(jnp.bfloat16)
    sample_id = jax.random.permutation(ks, N).astype(jnp.int32)

    loss = patch_nce_loss_v2(feat_q, feat_k, sample_id, nce_T=nce_T)
    loss = jax.block_until_ready(loss)

    ref = _reference_loss(feat_q, feat_k, sample_id, nce_T=nce_T)
    assert loss.shape == (B * N,)
    assert jnp.allclose(loss, ref, atol=1e-3, rtol=1e-3), (loss, ref)

    print("KERNEL_OK")
</pallas_src>

<mosaic_0001>
module attributes {stable_mosaic.version = 11 : i64} {
  func.func @_patchnce_kernel(%arg0: i32, %arg1: i32, %arg2: memref<1x16x32xbf16, #tpu.memory_space<vmem>>, %arg3: memref<1x16x32xbf16, #tpu.memory_space<vmem>>, %arg4: memref<1x16x32xbf16, #tpu.memory_space<vmem>>, %arg5: memref<1x1x16xf32, #tpu.memory_space<vmem>>) attributes {dimension_semantics = [#tpu.dimension_semantics<parallel>, #tpu.dimension_semantics<parallel>], iteration_bounds = array<i64: 2, 1>, scalar_prefetch = 0 : i64, scratch_operands = 0 : i64, tpu.core_type = #tpu.core_type<tc>, window_params = [{transform_indices = @transform_0, window_bounds = array<i64: 1, 16, 32>}, {transform_indices = @transform_1, window_bounds = array<i64: 1, 16, 32>}, {transform_indices = @transform_2, window_bounds = array<i64: 1, 16, 32>}, {transform_indices = @transform_3, window_bounds = array<i64: 1, 1, 16>}]} {
    %c0 = arith.constant 0 : index
    %c0_0 = arith.constant 0 : index
    %c0_1 = arith.constant 0 : index
    %0 = vector.load %arg2[%c0, %c0_0, %c0_1] : memref<1x16x32xbf16, #tpu.memory_space<vmem>>, vector<1x16x32xbf16>
    %1 = vector.shape_cast %0 : vector<1x16x32xbf16> to vector<16x32xbf16>
    %c0_2 = arith.constant 0 : index
    %c0_3 = arith.constant 0 : index
    %c0_4 = arith.constant 0 : index
    %2 = vector.load %arg3[%c0_2, %c0_3, %c0_4] : memref<1x16x32xbf16, #tpu.memory_space<vmem>>, vector<1x16x32xbf16>
    %3 = vector.shape_cast %2 : vector<1x16x32xbf16> to vector<16x32xbf16>
    %c0_5 = arith.constant 0 : index
    %c0_6 = arith.constant 0 : index
    %c0_7 = arith.constant 0 : index
    %4 = vector.load %arg4[%c0_5, %c0_6, %c0_7] : memref<1x16x32xbf16, #tpu.memory_space<vmem>>, vector<1x16x32xbf16>
    %5 = vector.shape_cast %4 : vector<1x16x32xbf16> to vector<16x32xbf16>
    %cst = arith.constant dense<0.000000e+00> : vector<16x16xf32>
    %6 = tpu.matmul %3, %1, %cst {dimension_numbers = #tpu.dot_dimension_numbers<[1], [1], [0], [0], [0, 0, 1, 0], [], []>} : vector<16x32xbf16>, vector<16x32xbf16>, vector<16x16xf32> -> vector<16x16xf32>
    %cst_8 = arith.constant dense<0xFF800000> : vector<16xf32>
    %7 = vector.multi_reduction <maximumf>, %6, %cst_8 [0] : vector<16x16xf32> to vector<16xf32>
    %8 = vector.shape_cast %7 : vector<16xf32> to vector<1x16xf32>
    %cst_9 = arith.constant 14.2857141 : f32
    %9 = vector.broadcast %cst_9 : f32 to vector<1x16xf32>
    %10 = arith.mulf %8, %9 : vector<1x16xf32>
    %cst_10 = arith.constant dense<0.000000e+00> : vector<16x16xf32>
    %11 = tpu.matmul %5, %1, %cst_10 {dimension_numbers = #tpu.dot_dimension_numbers<[1], [1], [0], [0], [0, 0, 1, 0], [], []>} : vector<16x32xbf16>, vector<16x32xbf16>, vector<16x16xf32> -> vector<16x16xf32>
    %cst_11 = arith.constant 14.2857141 : f32
    %12 = vector.broadcast %cst_11 : f32 to vector<16x16xf32>
    %13 = arith.mulf %11, %12 : vector<16x16xf32>
    %cst_12 = arith.constant dense<0xFF800000> : vector<16xf32>
    %14 = vector.multi_reduction <maximumf>, %13, %cst_12 [0] : vector<16x16xf32> to vector<16xf32>
    %15 = vector.shape_cast %14 : vector<16xf32> to vector<1x16xf32>
    %16 = vector.broadcast %15 : vector<1x16xf32> to vector<16x16xf32>
    %17 = arith.subf %13, %16 : vector<16x16xf32>
    %18 = math.exp %17 : vector<16x16xf32>
    %cst_13 = arith.constant dense<0.000000e+00> : vector<16xf32>
    %19 = vector.multi_reduction <add>, %18, %cst_13 [0] : vector<16x16xf32> to vector<16xf32>
    %20 = vector.shape_cast %19 : vector<16xf32> to vector<1x16xf32>
    %c16_i32 = arith.constant 16 : i32
    %21 = arith.muli %arg1, %c16_i32 : i32
    %22 = tpu.assume_multiple %21, 8 : i32
    %c0_14 = arith.constant 0 : index
    %23 = arith.index_cast %22 : i32 to index
    %c0_15 = arith.constant 0 : index
    %24 = vector.load %arg4[%c0_14, %23, %c0_15] : memref<1x16x32xbf16, #tpu.memory_space<vmem>>, vector<1x16x32xbf16>
    %25 = vector.shape_cast %24 : vector<1x16x32xbf16> to vector<16x32xbf16>
    %26 = arith.extf %1 : vector<16x32xbf16> to vector<16x32xf32>
    %27 = arith.extf %25 : vector<16x32xbf16> to vector<16x32xf32>
    %28 = arith.mulf %26, %27 : vector<16x32xf32>
    %cst_16 = arith.constant dense<0.000000e+00> : vector<16xf32>
    %29 = vector.multi_reduction <add>, %28, %cst_16 [1] : vector<16x32xf32> to vector<16xf32>
    %cst_17 = arith.constant 14.2857141 : f32
    %30 = vector.broadcast %cst_17 : f32 to vector<16xf32>
    %31 = arith.mulf %29, %30 : vector<16xf32>
    %32 = vector.shape_cast %31 : vector<16xf32> to vector<1x16xf32>
    %33 = math.log %20 : vector<1x16xf32>
    %34 = arith.addf %15, %33 : vector<1x16xf32>
    %35 = arith.subf %34, %32 : vector<1x16xf32>
    %36 = arith.maximumf %15, %10 : vector<1x16xf32>
    %37 = arith.subf %32, %15 : vector<1x16xf32>
    %38 = math.exp %37 : vector<1x16xf32>
    %39 = arith.subf %20, %38 : vector<1x16xf32>
    %cst_18 = arith.constant 0.000000e+00 : f32
    %40 = vector.broadcast %cst_18 : f32 to vector<1x16xf32>
    %41 = arith.maximumf %39, %40 : vector<1x16xf32>
    %42 = arith.subf %15, %36 : vector<1x16xf32>
    %43 = math.exp %42 : vector<1x16xf32>
    %44 = arith.mulf %41, %43 : vector<1x16xf32>
    %45 = arith.subf %10, %36 : vector<1x16xf32>
    %46 = math.exp %45 : vector<1x16xf32>
    %47 = arith.addf %44, %46 : vector<1x16xf32>
    %48 = math.log %47 : vector<1x16xf32>
    %49 = arith.addf %36, %48 : vector<1x16xf32>
    %50 = arith.subf %49, %10 : vector<1x16xf32>
    %cst_19 = arith.constant 0.699999988 : f32
    %51 = vector.broadcast %cst_19 : f32 to vector<1x16xf32>
    %52 = arith.mulf %51, %35 : vector<1x16xf32>
    %cst_20 = arith.constant 3.000000e-01 : f32
    %53 = vector.broadcast %cst_20 : f32 to vector<1x16xf32>
    %54 = arith.mulf %53, %50 : vector<1x16xf32>
    %55 = arith.addf %52, %54 : vector<1x16xf32>
    %c0_21 = arith.constant 0 : index
    %c0_22 = arith.constant 0 : index
    %c0_23 = arith.constant 0 : index
    %56 = vector.load %arg5[%c0_21, %c0_22, %c0_23] : memref<1x1x16xf32, #tpu.memory_space<vmem>>, vector<1x1x16xf32>
    %57 = vector.shape_cast %56 : vector<1x1x16xf32> to vector<1x16xf32>
    %58 = vector.shape_cast %55 : vector<1x16xf32> to vector<1x1x16xf32>
    tpu.vector_store %arg5[%c0_21, %c0_22, %c0_23], %58 {strides = array<i32>} : memref<1x1x16xf32, #tpu.memory_space<vmem>>, vector<1x1x16xf32>,
    return
  }
  func.func @transform_0(%arg0: i32, %arg1: i32) -> (i32, i32, i32) {
    %c0_i32 = arith.constant 0 : i32
    %c0_i32_0 = arith.constant 0 : i32
    return %arg0, %arg1, %c0_i32 : i32, i32, i32
  }
  func.func @transform_1(%arg0: i32, %arg1: i32) -> (i32, i32, i32) {
    %c0_i32 = arith.constant 0 : i32
    %c0_i32_0 = arith.constant 0 : i32
    %c0_i32_1 = arith.constant 0 : i32
    return %arg0, %c0_i32, %c0_i32_0 : i32, i32, i32
  }
  func.func @transform_2(%arg0: i32, %arg1: i32) -> (i32, i32, i32) {
    %c0_i32 = arith.constant 0 : i32
    %c0_i32_0 = arith.constant 0 : i32
    %c0_i32_1 = arith.constant 0 : i32
    return %arg0, %c0_i32, %c0_i32_0 : i32, i32, i32
  }
  func.func @transform_3(%arg0: i32, %arg1: i32) -> (i32, i32, i32) {
    %c0_i32 = arith.constant 0 : i32
    %c0_i32_0 = arith.constant 0 : i32
    return %arg0, %c0_i32, %arg1 : i32, i32, i32
  }
}

</mosaic_0001>

<llo_original>
// kernel: tpu_custom_call.1
$region0: #{tpu_custom_call.1}
  #allocation0 [shape = 'u32[]', space=smem, size = 0x4, offset = 0x4, fixed_abs, tag = 'smem constant byte address 0x4 - core index']
  #allocation1 [shape = 'u32[72,128]{1,0:T(1,128)}', space=vmem, size = 0x9000, scoped, tag = 'internal scratch']
  %s0 = inlined_call_operand.hbm [shape: bf16[2,16,32], index: 0, kind: input, shape index: {}]
  %s1 = inlined_call_operand.hbm [shape: bf16[2,16,32], index: 1, kind: input, shape index: {}]
  %s2 = inlined_call_operand.hbm [shape: bf16[2,16,32], index: 2, kind: input, shape index: {}]
  %s3 = inlined_call_operand.hbm [shape: f32[2,1,16], index: 3, kind: output, shape index: {}]
  %s4 = sld [smem:[#allocation0]]
  $region57: #{tpu_custom_call.1} parent=0
    _
  %s6 = ssub.s32 1, %s4
  %s7 = scalar_select 0, %s6, %s4
  $region1: #{tpu_custom_call.1} parent=0
    #allocation2 [shape = 'u8[8192]{0}', space=vmem, size = 0x2000, scoped, tag = 'input window, operand 0']
    #allocation3 [shape = 's32[2]{0}', space=sflag, size = 0x8, scoped, tag = 'scoped memory for tpu_custom_call.1']
    #allocation4 [shape = 's32[2]{0}', space=sflag, size = 0x8, scoped, tag = 'scoped memory for tpu_custom_call.1']
    #allocation5 [shape = 'u8[8192]{0}', space=vmem, size = 0x2000, scoped, tag = 'input window, operand 1']
    #allocation6 [shape = 's32[2]{0}', space=sflag, size = 0x8, scoped, tag = 'scoped memory for tpu_custom_call.1']
    #allocation7 [shape = 'u8[8192]{0}', space=vmem, size = 0x2000, scoped, tag = 'input window, operand 2']
    #allocation8 [shape = 'u8[1024]{0}', space=vmem, size = 0x400, scoped, tag = 'output window, operand 0']
    %8 = vsyncpa [#allocation3], 0
    %s9 = scalar_lea.sflag [#allocation3], 1
    %10 = vsyncpa %s9, 0
    %11 = vsyncpa [#allocation6], 0
    %s12 = scalar_lea.sflag [#allocation6], 1
    %13 = vsyncpa %s12, 0
    %14 = vsyncpa [#allocation4], 0
    %s15 = scalar_lea.sflag [#allocation4], 1
    %16 = vsyncpa %s15, 0
    loop: start=0, step=1, limit=4
    $region2: #{tpu_custom_call.1} parent=1 // loop_pre_header
      _
    $region3: #{tpu_custom_call.1} parent=1 // loop_header
      %s18 = sphi 0, %s22
      %p19 = scmp.ge.s32.totalorder %s18, 4
      %s25 = sphi 0, %s37
      %s26 = sphi 0, %s33
      %s27 = sphi 0, %s25
      %s28 = sphi 0, %s26
      %s29 = sphi 0, %s27
      %s30 = sphi 0, %s28
      %s42 = sphi 0, %s44
      %s45 = sphi 0, %s42
      %s46 = sphi 0, %s45
      %s62 = sphi 0, %s46
      %s68 = sphi 0, %s70
      %s71 = sphi 0, %s68
      %s72 = sphi 0, %s71
      %s88 = sphi 0, %s72
      %s94 = sphi 0, %s96
      %s97 = sphi 0, %s94
      %s98 = sphi 0, %s97
      %s114 = sphi 0, %s98
      %s122 = sphi 0, %s124
      %s125 = sphi 0, %s122
      %s126 = sphi 0, %s125
      %s142 = sphi 0, %s126
    $region4: #{tpu_custom_call.1} parent=1 // loop_header_branch
      %21 = sbr.rel (%p19) target = $region8
    $region5: #{tpu_custom_call.1} parent=1 // loop_body
      %s23 = ssub.s32 %s18, 1
      %s24 = ssub.s32 %s18, 2
      %s31 = sadd.s32 1, %s26
      %p32 = scmp.ge.s32.totalorder %s31, 1
      %s33 = scalar_select %p32, 0, %s31
      %s34 = sadd.s32 1, %s25
      %s35 = scalar_select %p32, %s34, %s25
      %p36 = scmp.ge.s32.totalorder %s35, 2
      %s37 = scalar_select %p36, 0, %s35
      %s38 = ssub.s32 %s25, %s37
      %s39 = ssub.s32 %s26, %s33
      %s40 = sor.u32 %s38, %s39
      %p41 = scmp.eq.s32.totalorder %s40, 0
      %s43 = sadd.s32 %s42, 1
      %s44 = scalar_select %p41, %s42, %s43
      %p47 = pneg %p41
      %p48 = scmp.eq.s32.totalorder %s18, 1
      %p49 = por %p47, %p48
      %p50 = scmp.ne.s32.totalorder %s42, %s45
      %p51 = scmp.eq.s32.totalorder %s18, 0
      %p52 = por %p50, %p51
      %p53 = scmp.ne.s32.totalorder %s42, %s45
      %p54 = scmp.eq.s32.totalorder %s23, 1
      %p55 = por %p53, %p54
      %p56 = scmp.ne.s32.totalorder %s45, %s46
      %p57 = scmp.eq.s32.totalorder %s23, 0
      %p58 = por %p56, %p57
      %p59 = scmp.ne.s32.totalorder %s45, %s46
      %p60 = scmp.eq.s32.totalorder %s24, 1
      %p61 = por %p59, %p60
      %p63 = scmp.ne.s32.totalorder %s46, %s62
      %p64 = scmp.eq.s32.totalorder %s24, 0
      %p65 = por %p63, %p64
      %s66 = ssub.s32 %s25, %s37
      %p67 = scmp.eq.s32.totalorder %s66, 0
      %s69 = sadd.s32 %s68, 1
      %s70 = scalar_select %p67, %s68, %s69
      %p73 = pneg %p67
      %p74 = scmp.eq.s32.totalorder %s18, 1
      %p75 = por %p73, %p74
      %p76 = scmp.ne.s32.totalorder %s68, %s71
      %p77 = scmp.eq.s32.totalorder %s18, 0
      %p78 = por %p76, %p77
      %p79 = scmp.ne.s32.totalorder %s68, %s71
      %p80 = scmp.eq.s32.totalorder %s23, 1
      %p81 = por %p79, %p80
      %p82 = scmp.ne.s32.totalorder %s71, %s72
      %p83 = scmp.eq.s32.totalorder %s23, 0
      %p84 = por %p82, %p83
      %p85 = scmp.ne.s32.totalorder %s71, %s72
      %p86 = scmp.eq.s32.totalorder %s24, 1
      %p87 = por %p85, %p86
      %p89 = scmp.ne.s32.totalorder %s72, %s88
      %p90 = scmp.eq.s32.totalorder %s24, 0
      %p91 = por %p89, %p90
      %s92 = ssub.s32 %s25, %s37
      %p93 = scmp.eq.s32.totalorder %s92, 0
      %s95 = sadd.s32 %s94, 1
      %s96 = scalar_select %p93, %s94, %s95
      %p99 = pneg %p93
      %p100 = scmp.eq.s32.totalorder %s18, 1
      %p101 = por %p99, %p100
      %p102 = scmp.ne.s32.totalorder %s94, %s97
      %p103 = scmp.eq.s32.totalorder %s18, 0
      %p104 = por %p102, %p103
      %p105 = scmp.ne.s32.totalorder %s94, %s97
      %p106 = scmp.eq.s32.totalorder %s23, 1
      %p107 = por %p105, %p106
      %p108 = scmp.ne.s32.totalorder %s97, %s98
      %p109 = scmp.eq.s32.totalorder %s23, 0
      %p110 = por %p108, %p109
      %p111 = scmp.ne.s32.totalorder %s97, %s98
      %p112 = scmp.eq.s32.totalorder %s24, 1
      %p113 = por %p111, %p112
      %p115 = scmp.ne.s32.totalorder %s98, %s114
      %p116 = scmp.eq.s32.totalorder %s24, 0
      %p117 = por %p115, %p116
      %s118 = ssub.s32 %s25, %s37
      %s119 = ssub.s32 %s26, %s33
      %s120 = sor.u32 %s118, %s119
      %p121 = scmp.eq.s32.totalorder %s120, 0
      %s123 = sadd.s32 %s122, 1
      %s124 = scalar_select %p121, %s122, %s123
      %p127 = pneg %p121
      %p128 = scmp.eq.s32.totalorder %s18, 1
      %p129 = por %p127, %p128
      %p130 = scmp.ne.s32.totalorder %s122, %s125
      %p131 = scmp.eq.s32.totalorder %s18, 0
      %p132 = por %p130, %p131
      %p133 = scmp.ne.s32.totalorder %s122, %s125
      %p134 = scmp.eq.s32.totalorder %s23, 1
      %p135 = por %p133, %p134
      %p136 = scmp.ne.s32.totalorder %s125, %s126
      %p137 = scmp.eq.s32.totalorder %s23, 0
      %p138 = por %p136, %p137
      %p139 = scmp.ne.s32.totalorder %s125, %s126
      %p140 = scmp.eq.s32.totalorder %s24, 1
      %p141 = por %p139, %p140
      %p143 = scmp.ne.s32.totalorder %s126, %s142
      %p144 = scmp.eq.s32.totalorder %s24, 0
      %p145 = por %p143, %p144
      %p146 = scmp.le.s32.totalorder 1, %s18
      %p147 = scmp.lt.s32.totalorder %s18, 3
      %p148 = pnand %p146, %p147
      %p149 = pneg %p148
      // Predicated region
      $region9: #{tpu_custom_call.1} parent=5 // pred_check
        _
      $region10: #{tpu_custom_call.1} parent=5 // pred_check_branch
        %151 = sbr.rel (%p148) target = $region12
      $region11: #{tpu_custom_call.1} parent=5 // pred_region
        %s152 = ssub.s32 %s18, 1
      $region12: #{tpu_custom_call.1} parent=5 // pred_fallthru
        _
      %p153 = scmp.lt.s32.totalorder %s18, 2
      // Predicated region
      $region13: #{tpu_custom_call.1} parent=5 // pred_check
        %p154 = pneg %p153
      $region14: #{tpu_custom_call.1} parent=5 // pred_check_branch
        %156 = sbr.rel (%p154) target = $region16
      $region15: #{tpu_custom_call.1} parent=5 // pred_region
        // Predicated region
        $region17: #{tpu_custom_call.1} parent=15 // pred_check
          %p157 = pneg %p52
        $region18: #{tpu_custom_call.1} parent=15 // pred_check_branch
          %159 = sbr.rel (%p157) target = $region20
        $region19: #{tpu_custom_call.1} parent=15 // pred_region
          %s160 = sand.u32 %s42, 1
          %s161 = scalar_lea.sflag [#allocation3], %s160
          %s162 = sand.u32 %s42, 1
          %s163 = smul.addr %s162, 8
          %s164 = scalar_lea.vmem [#allocation2], %s163
          %s165 = smul.u32 2, %s26
          %167 = vsyncadd %s161, 0
          %s168 = smul.addr %s25, 2
          %s169 = sadd.s32 %s165, %s168
          %s170 = smul.addr %s169, 4
          %s171 = scalar_lea.hbm %s0, %s170
          %s172 = sshll.u32 %s171, 4
          %s173 = int_to_ptr.hbm [resolvable:$true] %s172
          %s174 = sshll.u32 %s164, 4
          %s175 = int_to_ptr.vmem [resolvable:$true] %s174
          %180 = dma.hbm_to_vmem [thread:$0]  %s173, 128, %s175, %s161, 64, 64, 4
        $region20: #{tpu_custom_call.1} parent=15 // pred_fallthru
          _
        // Predicated region
        $region21: #{tpu_custom_call.1} parent=15 // pred_check
          %p181 = pneg %p78
        $region22: #{tpu_custom_call.1} parent=15 // pred_check_branch
          %183 = sbr.rel (%p181) target = $region24
        $region23: #{tpu_custom_call.1} parent=15 // pred_region
          %s184 = sand.u32 %s18, 1
          %s185 = scalar_lea.sflag [#allocation6], %s184
          %s186 = sand.u32 %s68, 1
          %s187 = smul.addr %s186, 8
          %s188 = scalar_lea.vmem [#allocation5], %s187
          %190 = vsyncadd %s185, 0
          %s191 = smul.addr %s25, 2
          %s192 = smul.addr %s191, 4
          %s193 = scalar_lea.hbm %s1, %s192
          %s194 = sshll.u32 %s193, 4
          %s195 = int_to_ptr.hbm [resolvable:$true] %s194
          %s196 = sshll.u32 %s188, 4
          %s197 = int_to_ptr.vmem [resolvable:$true] %s196
          %202 = dma.hbm_to_vmem [thread:$0]  %s195, 128, %s197, %s185, 64, 64, 4
        $region24: #{tpu_custom_call.1} parent=15 // pred_fallthru
          _
        // Predicated region
        $region25: #{tpu_custom_call.1} parent=15 // pred_check
          %p203 = pneg %p104
        $region26: #{tpu_custom_call.1} parent=15 // pred_check_branch
          %205 = sbr.rel (%p203) target = $region28
        $region27: #{tpu_custom_call.1} parent=15 // pred_region
          %s206 = sand.u32 %s18, 1
          %s207 = scalar_lea.sflag [#allocation6], %s206
          %s208 = sand.u32 %s94, 1
          %s209 = smul.addr %s208, 8
          %s210 = scalar_lea.vmem [#allocation7], %s209
          %212 = vsyncadd %s207, 0
          %s213 = smul.addr %s25, 2
          %s214 = smul.addr %s213, 4
          %s215 = scalar_lea.hbm %s2, %s214
          %s216 = sshll.u32 %s215, 4
          %s217 = int_to_ptr.hbm [resolvable:$true] %s216
          %s218 = sshll.u32 %s210, 4
          %s219 = int_to_ptr.vmem [resolvable:$true] %s218
          %224 = dma.hbm_to_vmem [thread:$0]  %s217, 128, %s219, %s207, 64, 64, 4
        $region28: #{tpu_custom_call.1} parent=15 // pred_fallthru
          _
      $region16: #{tpu_custom_call.1} parent=5 // pred_fallthru
        _
      %p225 = scmp.le.s32.totalorder 1, %s18
      %p226 = scmp.lt.s32.totalorder %s18, 3
      %p227 = pnand %p225, %p226
      %p228 = pneg %p227
      // Predicated region
      $region29: #{tpu_custom_call.1} parent=5 // pred_check
        _
      $region30: #{tpu_custom_call.1} parent=5 // pred_check_branch
        %230 = sbr.rel (%p227) target = $region32
      $region31: #{tpu_custom_call.1} parent=5 // pred_region
        %s231 = ssub.s32 %s18, 1
        %s232 = sand.u32 %s45, 1
        %s233 = scalar_lea.sflag [#allocation3], %s232
        %s234 = sand.u32 %s45, 1
        %s235 = smul.addr %s234, 8
        %s236 = scalar_lea.vmem [#allocation2], %s235
        // Predicated region
        $region33: #{tpu_custom_call.1} parent=31 // pred_check
          %p237 = pneg %p58
        $region34: #{tpu_custom_call.1} parent=31 // pred_check_branch
          %239 = sbr.rel (%p237) target = $region36
        $region35: #{tpu_custom_call.1} parent=31 // pred_region
          %241 = dma.done %s233, 128
        $region36: #{tpu_custom_call.1} parent=31 // pred_fallthru
          _
        %s242 = sand.u32 %s23, 1
        %s243 = scalar_lea.sflag [#allocation6], %s242
        %s244 = sand.u32 %s71, 1
        %s245 = smul.addr %s244, 8
        %s246 = scalar_lea.vmem [#allocation5], %s245
        // Predicated region
        $region37: #{tpu_custom_call.1} parent=31 // pred_check
          %p247 = pneg %p84
        $region38: #{tpu_custom_call.1} parent=31 // pred_check_branch
          %249 = sbr.rel (%p247) target = $region40
        $region39: #{tpu_custom_call.1} parent=31 // pred_region
          %251 = dma.done %s243, 128
        $region40: #{tpu_custom_call.1} parent=31 // pred_fallthru
          _
        %s252 = sand.u32 %s23, 1
        %s253 = scalar_lea.sflag [#allocation6], %s252
        %s254 = sand.u32 %s97, 1
        %s255 = smul.addr %s254, 8
        %s256 = scalar_lea.vmem [#allocation7], %s255
        // Predicated region
        $region41: #{tpu_custom_call.1} parent=31 // pred_check
          %p257 = pneg %p110
        $region42: #{tpu_custom_call.1} parent=31 // pred_check_branch
          %259 = sbr.rel (%p257) target = $region44
        $region43: #{tpu_custom_call.1} parent=31 // pred_region
          %261 = dma.done %s253, 128
        $region44: #{tpu_custom_call.1} parent=31 // pred_fallthru
          _
        %s262 = sand.u32 %s45, 1
        %s263 = scalar_lea.sflag [#allocation3], %s262
        %s264 = sand.u32 %s45, 1
        %s265 = smul.addr %s264, 8
        %s266 = scalar_lea.vmem [#allocation2], %s265
        %p267 = pneg %p58
        %p268 = pneg %p55
        %s269 = sand.u32 %s23, 1
        %s270 = scalar_lea.sflag [#allocation6], %s269
        %s271 = sand.u32 %s71, 1
        %s272 = smul.addr %s271, 8
        %s273 = scalar_lea.vmem [#allocation5], %s272
        %p274 = pneg %p84
        %p275 = pneg %p81
        %s276 = sand.u32 %s23, 1
        %s277 = scalar_lea.sflag [#allocation6], %s276
        %s278 = sand.u32 %s97, 1
        %s279 = smul.addr %s278, 8
        %s280 = scalar_lea.vmem [#allocation7], %s279
        %p281 = pneg %p110
        %p282 = pneg %p107
        %p283 = pneg %p138
        %p284 = pneg %p135
        %s285 = sand.u32 %s125, 1
        %s286 = scalar_lea.sflag [#allocation4], %s285
        %s287 = sand.u32 %s125, 1
        %s288 = scalar_lea.vmem [#allocation8], %s287
        %s289 = smul.u32 2, %s28
        %v291 = vld [vmem:[%s236] sm:$0xf]
        %v292 = vld [vmem:[%s236 + $0x4] sm:$0xf]
        %v293 = vld [vmem:[%s246] sm:$0xf]
        %v294 = vld [vmem:[%s246 + $0x4] sm:$0xf]
        %v295 = vld [vmem:[%s256] sm:$0xf]
        %v296 = vld [vmem:[%s256 + $0x4] sm:$0xf]
        %v299 = vunpack.c.l.b16 %v293
        %v300 = vunpack.c.l.b16 %v294
        %v301 = vpack.c.b16 %v300, %v299
        %v304 = vunpack.c.l.b16 %v291
        %v305 = vunpack.c.l.b16 %v292
        %v306 = vpack.c.b16 %v305, %v304
        %vm307 = vcmask 261120
        %v309 = vsel %vm307, %v301, 0
        %v312 = vsel %vm307, %v306, 0
        %314 = vmatpush.bf16.xpose.msra.mxu0 0
        %315 = vmatpush.bf16.xpose.msra.mxu0 0
        %316 = vmatpush.bf16.xpose.msra.mxu0 0
        %317 = vmatpush.bf16.xpose.msra.mxu0 0
        %318 = vmatpush.bf16.xpose.msra.mxu0 0
        %319 = vmatpush.bf16.xpose.msra.mxu0 0
        %320 = vmatpush.bf16.xpose.msra.mxu0 0
        %321 = vmatpush.bf16.xpose.msra.mxu0 %v312
        %322 = vmatmul.bf16.gmra.mxu0 %v309
        %v323 = vpop.f32.mrf.mxu0
        %v324 = vadd.f32 0.0, %v323
        %v325 = vpop.f32.mrf.mxu0
        %v326 = vadd.f32 0.0, %v325
        %327 = vdwg.mxu0
        %vm328 = vcmask 130048
        %v329 = vsel %vm328, %v324, -inf
        %v330 = vsel %vm328, %v326, -inf
        %v331 = vmax.f32 %v329, %v330
        %v332 = vrot.slane %v331, 4
        %v333 = vmax.f32 %v331, %v332
        %v334 = vrot.slane %v333, 2
        %v335 = vmax.f32 %v333, %v334
        %v336 = vrot.slane %v335, 1
        %v337 = vmax.f32 %v335, %v336
        %v338 = vmul.f32 %v337, 14.285714
        %v341 = vunpack.c.l.b16 %v295
        %v342 = vunpack.c.l.b16 %v296
        %v343 = vpack.c.b16 %v342, %v341
        %v345 = vsel %vm307, %v343, 0
        %347 = vmatpush.bf16.xpose.msra.mxu0 0
        %348 = vmatpush.bf16.xpose.msra.mxu0 0
        %349 = vmatpush.bf16.xpose.msra.mxu0 0
        %350 = vmatpush.bf16.xpose.msra.mxu0 0
        %351 = vmatpush.bf16.xpose.msra.mxu0 0
        %352 = vmatpush.bf16.xpose.msra.mxu0 0
        %353 = vmatpush.bf16.xpose.msra.mxu0 0
        %354 = vmatpush.bf16.xpose.msra.mxu0 %v312
        %355 = vmatmul.bf16.gmra.mxu0 %v345
        %v356 = vpop.f32.mrf.mxu0
        %v357 = vadd.f32 0.0, %v356
        %v358 = vpop.f32.mrf.mxu0
        %v359 = vadd.f32 0.0, %v358
        %360 = vdwg.mxu0
        %v361 = vmul.f32 %v357, 14.285714
        %v362 = vmul.f32 %v359, 14.285714
        %v363 = vsel %vm328, %v361, -inf
        %v364 = vsel %vm328, %v362, -inf
        %v365 = vmax.f32 %v363, %v364
        %v366 = vrot.slane %v365, 4
        %v367 = vmax.f32 %v365, %v366
        %v368 = vrot.slane %v367, 2
        %v369 = vmax.f32 %v367, %v368
        %v370 = vrot.slane %v369, 1
        %v371 = vmax.f32 %v369, %v370
        %v372 = vsub.f32 %v361, %v371
        %v373 = vsub.f32 %v362, %v371
        %v374 = vmul.f32 %v372, 1.442695
        %v375 = vpow.pop %v374
        %v376 = vmul.f32 %v373, 1.442695
        %v377 = vpow.pop %v376
        %v378 = vsel %vm328, %v375, 0.0
        %v379 = vsel %vm328, %v377, 0.0
        %v380 = vadd.f32 %v378, %v379
        %v381 = vrot.slane %v380, 4
        %v382 = vadd.f32 %v380, %v381
        %v383 = vrot.slane %v382, 2
        %v384 = vadd.f32 %v382, %v383
        %v385 = vrot.slane %v384, 1
        %v386 = vadd.f32 %v384, %v385
        %s387 = smul.u32 %s28, 16
        %s388 = sshra.s32 %s387, 3
        %s389 = sand.u32 %s387, 7
        %s390 = smul.addr %s388, 4
        %s391 = scalar_lea.vmem %s256, %s390 [#allocation7]
        %v392 = vld [vmem:[%s391] sm:$0xf]
        %v393 = vld [vmem:[%s391 + $0x4] sm:$0xf]
        %v394 = vunpack.c.l.bf16 %v291
        %v395 = vunpack.c.l.bf16 %v292
        %v396 = vunpack.c.l.bf16 %v392
        %v397 = vunpack.c.l.bf16 %v393
        %v398 = vmul.f32 %v394, %v396
        %v399 = vmul.f32 %v395, %v397
        %v400 = vsel %vm307, %v398, 0.0
        %401 = vadd.xlane.f32.xlu0 %v400
        %v402 = vpop.xlane.xlu0 %401
        %v403 = vsel %vm307, %v399, 0.0
        %404 = vadd.xlane.f32.xlu0 %v403
        %v405 = vpop.xlane.xlu0 %404
        %v406 = vmul.f32 %v402, 14.285714
        %v407 = vmul.f32 %v405, 14.285714
        %v408 = vlog2.pop %v386
        %v409 = vmul.f32 %v408, 0.6931472
        %v410 = vadd.f32 %v371, %v409
        %v413 = vlaneseq
        %v414 = vand.u32 %v413, 127
        %v415 = vperm.slane %v406, %v414
        %v416 = vadd.s32 %v414, 4294967288
        %v417 = vperm.slane %v407, %v416
        %vm418 = vcmask 130112
        %v419 = vsel %vm418, %v417, %v415
        %v421 = vsub.f32 %v410, %v419
        %v422 = vmax.f32 %v371, %v338
        %v424 = vlaneseq
        %v425 = vshrl.u32 %v424, 7
        %427 = vset.pattern.permute.xlu0 %v425
        %428 = vperm.xlu0 %427, %v371
        %v429 = vpop.permute.xlu0 %428
        %v430 = vlaneseq
        %v431 = vshrl.u32 %v430, 7
        %v432 = vadd.s32 %v431, 8
        %433 = vset.pattern.permute.xlu0 %v432
        %434 = vperm.xlu0 %433, %v371
        %v435 = vpop.permute.xlu0 %434
        %v438 = vsub.f32 %v406, %v429
        %v439 = vsub.f32 %v407, %v435
        %v440 = vmul.f32 %v438, 1.442695
        %v441 = vpow.pop %v440
        %v442 = vmul.f32 %v439, 1.442695
        %v443 = vpow.pop %v442
        %446 = vset.pattern.permute.xlu0 0
        %447 = vperm.xlu0 %446, %v441
        %v448 = vpop.permute.xlu0 %447
        %449 = vset.pattern.permute.xlu0 0
        %450 = vperm.xlu0 %449, %v443
        %v451 = vpop.permute.xlu0 %450
        %v452 = vperm.slane %v448, %v414
        %v453 = vperm.slane %v451, %v416
        %v454 = vsel %vm418, %v453, %v452
        %v456 = vsub.f32 %v386, %v454
        %v457 = vmax.f32 %v456, 0.0
        %v458 = vsub.f32 %v371, %v422
        %v459 = vmul.f32 %v458, 1.442695
        %v460 = vpow.pop %v459
        %v461 = vmul.f32 %v457, %v460
        %v462 = vsub.f32 %v338, %v422
        %v463 = vmul.f32 %v462, 1.442695
        %v464 = vpow.pop %v463
        %v465 = vadd.f32 %v461, %v464
        %v466 = vlog2.pop %v465
        %v467 = vmul.f32 %v466, 0.6931472
        %v468 = vadd.f32 %v422, %v467
        %v469 = vsub.f32 %v468, %v338
        %v470 = vmul.f32 %v421, 0.7
        %v471 = vmul.f32 %v469, 0.3
        %v472 = vadd.f32 %v470, %v471
        %vm473 = vcmask 122880
        %474 = vst.msk [vmem:[%s288] sm:$0x1] %vm473, %v472
        %s475 = sand.u32 %s125, 1
        %s476 = scalar_lea.sflag [#allocation4], %s475
        %s477 = sand.u32 %s125, 1
        %s478 = scalar_lea.vmem [#allocation8], %s477
        // Predicated region
        $region45: #{tpu_custom_call.1} parent=31 // pred_check
          %p479 = pneg %p135
        $region46: #{tpu_custom_call.1} parent=31 // pred_check_branch
          %481 = sbr.rel (%p479) target = $region48
        $region47: #{tpu_custom_call.1} parent=31 // pred_region
          %483 = vsyncadd %s476, 0
          %s484 = sadd.s32 %s28, %s27
          %s485 = scalar_lea.hbm %s3, %s484
          %s487 = sshll.u32 %s478, 4
          %s488 = int_to_ptr.vmem [resolvable:$true] %s487
          %s489 = sshll.u32 %s485, 4
          %s490 = int_to_ptr.hbm [resolvable:$true] %s489
          %492 = dma.vmem_to_hbm [thread:$0]  %s488, 16, %s490, %s476
        $region48: #{tpu_custom_call.1} parent=31 // pred_fallthru
          _
      $region32: #{tpu_custom_call.1} parent=5 // pred_fallthru
        _
      %p493 = scmp.le.s32.totalorder 2, %s18
      // Predicated region
      $region49: #{tpu_custom_call.1} parent=5 // pred_check
        %p494 = pneg %p493
      $region50: #{tpu_custom_call.1} parent=5 // pred_check_branch
        %496 = sbr.rel (%p494) target = $region52
      $region51: #{tpu_custom_call.1} parent=5 // pred_region
        %s497 = ssub.s32 %s18, 2
        // Predicated region
        $region53: #{tpu_custom_call.1} parent=51 // pred_check
          %p498 = pneg %p141
        $region54: #{tpu_custom_call.1} parent=51 // pred_check_branch
          %500 = sbr.rel (%p498) target = $region56
        $region55: #{tpu_custom_call.1} parent=51 // pred_region
          %s501 = sand.u32 %s126, 1
          %s502 = scalar_lea.sflag [#allocation4], %s501
          %s503 = sand.u32 %s126, 1
          %s504 = scalar_lea.vmem [#allocation8], %s503
          %506 = dma.done %s502, 16
        $region56: #{tpu_custom_call.1} parent=51 // pred_fallthru
          _
      $region52: #{tpu_custom_call.1} parent=5 // pred_fallthru
        _
    $region6: #{tpu_custom_call.1} parent=1 // loop_footer
      %s22 = sadd.s32 1, %s18
    $region7: #{tpu_custom_call.1} parent=1 // loop_footer_branch
      %17 = sbr.rel target = $region3
    $region8: #{tpu_custom_call.1} parent=1 // loop_exit
      _
    %507 = vsyncpa [#allocation3], 1
    %s508 = scalar_lea.sflag [#allocation3], 1
    %509 = vsyncpa %s508, 1
    %510 = vsyncpa [#allocation6], 1
    %s511 = scalar_lea.sflag [#allocation6], 1
    %512 = vsyncpa %s511, 1
    %513 = vsyncpa [#allocation4], 1
    %s514 = scalar_lea.sflag [#allocation4], 1
    %515 = vsyncpa %s514, 1

</llo_original>
